<compile_context>
chip_gen: v5e
topology: v5e:2x2
jax: 0.10.0
libtpu: 0.0.40
codegen_flags: <defaults>
</compile_context>

<pallas_src>
import functools

import jax
import jax.numpy as jnp
from jax import lax
from jax.experimental import pallas as pl
from jax.experimental.pallas import tpu as pltpu

BN_EPS = 1e-5
_LANE = 128


def _round_up(x, m):
    return ((x + m - 1) // m) * m


def _stats_kernel(x_ref, gram_ref, sum_ref, *, p_valid):
    # x_ref: (BN_BLK, Cin, TILE_P) in the input's native dtype.
    # gram_ref: (1, Cin, Cin), sum_ref: (1, Cin, 1) -- per-batch-block partial accumulators,
    # resident across the pixel-tile axis only (axis 1 of the grid).
    t = pl.program_id(1)

    @pl.when(t == 0)
    def _():
        gram_ref[...] = jnp.zeros_like(gram_ref)
        sum_ref[...] = jnp.zeros_like(sum_ref)

    bn_blk, cin, tile_p = x_ref.shape
    # Mask columns past the true pixel count: the ragged last tile's out-of-bounds lanes hold
    # undefined VMEM data and must not pollute the reductions (cheap VPU select, hoisted).
    col = t * tile_p + lax.broadcasted_iota(jnp.int32, (1, tile_p), 1)
    valid = col < p_valid

    g_acc = jnp.zeros((cin, cin), jnp.float32)
    s_acc = jnp.zeros((cin, 1), jnp.float32)
    for b in range(bn_blk):  # small static unroll (bn_blk <= 8)
        xv = x_ref[b]
        xm = jnp.where(valid, xv, jnp.zeros_like(xv))
        # Gram trick: accumulate X X^T and sum(X); Cout-side stats are derived in the wrapper.
        g_acc = g_acc + jnp.einsum("cp,dp->cd", xm, xm,
                                   preferred_element_type=jnp.float32)
        s_acc = s_acc + jnp.sum(xm.astype(jnp.float32), axis=1, keepdims=True)
    gram_ref[0] += g_acc
    sum_ref[0] += s_acc


def _apply_kernel(x_ref, w_ref, shift_ref, o_ref):
    # w_ref: (Cout, Cin) with gamma * inv_std already folded in; shift = beta - mean * scale.
    # Output tile (BN_BLK, Cout, TILE_P) is lane-dense; the partial edge tile's store is masked
    # by Pallas, so the HBM output stays unpadded.
    bn_blk = x_ref.shape[0]
    cout, tile_p = o_ref.shape[1], o_ref.shape[2]
    wv = w_ref[...]                                          # hoisted out of the unroll
    sh = jnp.broadcast_to(shift_ref[...], (cout, tile_p))    # hoisted broadcast
    for b in range(bn_blk):
        y = jnp.dot(wv, x_ref[b], preferred_element_type=jnp.float32)
        o_ref[b] = (y + sh).astype(o_ref.dtype)


def downsample_b_forward(x_nchw, conv_w, bn_gamma, bn_beta, stride):
    """x_nchw: (N, Cin, H, W); conv_w: (Cout, Cin, 1, 1); bn_gamma/bn_beta: (Cout,)."""
    n, cin, h, w = x_nchw.shape
    cout = conv_w.shape[0]

    # The 1x1 stride-s conv only reads the strided pixel grid.  Single wrapper-side HBM pass
    # (one fused XLA slice); no pad, no upcast, no post-kernel crop.
    x_s = x_nchw[:, :, ::stride, ::stride] if stride > 1 else x_nchw
    ho, wo = x_s.shape[2], x_s.shape[3]
    p = ho * wo
    x3 = x_s.reshape(n, cin, p)          # free reshape: channels-first, flat pixel axis last
    # TODO(synk): fold the stride-s subsample into the kernel DMA (strided/element BlockSpec)
    # to remove this last wrapper pass over x.

    dt = x3.dtype
    dt_bytes = jnp.dtype(dt).itemsize

    # ---- tile sizing from a VMEM byte budget (v7x: 64 MiB/TC, v5e/v6e: 128 MiB) ----
    try:
        vmem_cap = int(pltpu.get_tpu_info().vmem_capacity_bytes)
    except Exception:
        vmem_cap = 64 << 20
    vmem_limit = int(min(vmem_cap // 2, 64 << 20))
    budget = max(vmem_limit // 6, 1 << 20)      # per-step in+out block bytes (pre double-buffer)

    bytes_per_px = (cin + cout) * dt_bytes
    p128 = _round_up(p, _LANE)
    max_tile_p = max(_LANE, (budget // bytes_per_px) // _LANE * _LANE)
    if p128 <= max_tile_p:
        tile_p = p128
    else:
        n_tiles = pl.cdiv(p128, max_tile_p)
        tile_p = _round_up(pl.cdiv(p128, n_tiles), _LANE)   # at most one 128-lane tail of waste

    # Pack several images per grid step when a single tile covers the whole image
    # (amortizes ~0.35us/step grid overhead); keep the static unroll small.
    bn_blk = 1
    if tile_p >= p128:
        cap = min(8, max(1, budget // (bytes_per_px * tile_p)))
        for d in range(1, n + 1):
            if n % d == 0 and d <= cap:
                bn_blk = d

    grid = (n // bn_blk, pl.cdiv(p, tile_p))
    n_bb = grid[0]

    # ---- phase 1: per-batch-block partial Gram (Cin x Cin) and sum (Cin,) of strided x ----
    gram_p, sum_p = pl.pallas_call(
        functools.partial(_stats_kernel, p_valid=p),
        out_shape=(jax.ShapeDtypeStruct((n_bb, cin, cin), jnp.float32),
                   jax.ShapeDtypeStruct((n_bb, cin, 1), jnp.float32)),
        grid_spec=pltpu.PrefetchScalarGridSpec(
            num_scalar_prefetch=0,
            grid=grid,
            in_specs=[pl.BlockSpec((bn_blk, cin, tile_p), lambda b, t: (b, 0, t))],
            out_specs=[pl.BlockSpec((1, cin, cin), lambda b, t: (b, 0, 0)),
                       pl.BlockSpec((1, cin, 1), lambda b, t: (b, 0, 0))],
        ),
        compiler_params=pltpu.CompilerParams(
            dimension_semantics=("parallel", "arbitrary"),
            vmem_limit_bytes=vmem_limit),
    )(x3)

    # ---- tiny per-channel BN math in plain JAX ----
    g = jnp.sum(gram_p, axis=0)                       # (Cin, Cin) = sum_p x x^T
    sx = jnp.sum(sum_p, axis=0)[:, 0]                 # (Cin,)     = sum_p x
    m_true = jnp.float32(n * p)                       # true pixel count (no padding exists)
    w2 = conv_w.reshape(cout, cin).astype(jnp.float32)
    sum_y = w2 @ sx                                   # (Cout,)
    sumsq_y = jnp.sum((w2 @ g) * w2, axis=1)          # diag(W G W^T)
    mean = sum_y / m_true
    var = jnp.maximum(sumsq_y / m_true - mean * mean, 0.0)   # biased (training-mode) variance
    inv_std = lax.rsqrt(var + BN_EPS)
    scale = bn_gamma.astype(jnp.float32) * inv_std
    shift = (bn_beta.astype(jnp.float32) - mean * scale).reshape(cout, 1)
    w_scaled = (w2 * scale[:, None]).astype(dt)       # fold BN scale into the conv weight

    # ---- phase 2: y = W_scaled @ x + shift; lane-dense tiles, unpadded output ----
    out3 = pl.pallas_call(
        _apply_kernel,
        out_shape=jax.ShapeDtypeStruct((n, cout, p), dt),
        grid_spec=pltpu.PrefetchScalarGridSpec(
            num_scalar_prefetch=0,
            grid=grid,
            in_specs=[
                pl.BlockSpec((bn_blk, cin, tile_p), lambda b, t: (b, 0, t)),
                pl.BlockSpec((cout, cin), lambda b, t: (0, 0)),
                pl.BlockSpec((cout, 1), lambda b, t: (0, 0)),
            ],
            out_specs=pl.BlockSpec((bn_blk, cout, tile_p), lambda b, t: (b, 0, t)),
        ),
        compiler_params=pltpu.CompilerParams(
            dimension_semantics=("parallel", "parallel"),
            vmem_limit_bytes=vmem_limit),
    )(x3, w_scaled, shift)

    return out3.reshape(n, cout, ho, wo)   # free reshape back to NCHW


def reference_forward(x_nchw, conv_w, bn_gamma, bn_beta, stride):
    """Pure-JAX reference of DownsampleB.forward (conv1x1 stride s, no bias; BN batch stats)."""
    x_s = x_nchw[:, :, ::stride, ::stride]
    y = jnp.einsum("nchw,oc->nohw", x_s,
                   conv_w.reshape(conv_w.shape[0], conv_w.shape[1]))
    mean = jnp.mean(y, axis=(0, 2, 3), keepdims=True)
    var = jnp.mean((y - mean) ** 2, axis=(0, 2, 3), keepdims=True)
    return ((y - mean) / jnp.sqrt(var + BN_EPS) * bn_gamma.reshape(1, -1, 1, 1)
            + bn_beta.reshape(1, -1, 1, 1))


if __name__ == "__main__":
    # DownsampleB(nIn=4, nOut=8, stride=2) on x of shape (2, 4, 16, 16)  [NCHW]
    n_in, n_out, stride = 4, 8, 2
    key = jax.random.PRNGKey(0)
    kx, kw = jax.random.split(key)

    x = jax.random.normal(kx, (2, n_in, 16, 16), dtype=jnp.float32)
    conv_w = jax.random.normal(kw, (n_out, n_in, 1, 1), dtype=jnp.float32) * 0.1
    bn_gamma = jnp.ones((n_out,), dtype=jnp.float32)   # PyTorch BatchNorm2d init: weight=1
    bn_beta = jnp.zeros((n_out,), dtype=jnp.float32)   # PyTorch BatchNorm2d init: bias=0

    out = downsample_b_forward(x, conv_w, bn_gamma, bn_beta, stride)
    out = jax.block_until_ready(out)

    ref = reference_forward(x, conv_w, bn_gamma, bn_beta, stride)
    assert out.shape == (2, n_out, 8, 8), out.shape
    assert jnp.allclose(out, ref, atol=1e-4, rtol=1e-4), "mismatch vs reference"

    print("KERNEL_OK")
</pallas_src>

<mosaic_0001>
module attributes {stable_mosaic.version = 11 : i64} {
  func.func @_stats_kernel(%arg0: i32, %arg1: i32, %arg2: memref<2x4x128xf32, #tpu.memory_space<vmem>>, %arg3: memref<1x4x4xf32, #tpu.memory_space<vmem>>, %arg4: memref<1x4x1xf32, #tpu.memory_space<vmem>>) attributes {dimension_semantics = [#tpu.dimension_semantics<parallel>, #tpu.dimension_semantics<arbitrary>], iteration_bounds = array<i64: 1, 1>, scalar_prefetch = 0 : i64, scratch_operands = 0 : i64, tpu.core_type = #tpu.core_type<tc>, window_params = [{transform_indices = @transform_0, window_bounds = array<i64: 2, 4, 128>}, {transform_indices = @transform_1, window_bounds = array<i64: 1, 4, 4>}, {transform_indices = @transform_2, window_bounds = array<i64: 1, 4, 1>}]} {
    %c0_i32 = arith.constant 0 : i32
    %0 = arith.cmpi eq, %arg1, %c0_i32 : i32
    %1 = arith.extui %0 : i1 to i32
    %c0_i32_0 = arith.constant 0 : i32
    %2 = arith.cmpi ne, %1, %c0_i32_0 : i32
    scf.if %2 {
      %cst_24 = arith.constant 0.000000e+00 : f32
      %45 = vector.broadcast %cst_24 : f32 to vector<1x4x4xf32>
      %c0_25 = arith.constant 0 : index
      %c0_26 = arith.constant 0 : index
      %c0_27 = arith.constant 0 : index
      %46 = vector.load %arg3[%c0_25, %c0_26, %c0_27] : memref<1x4x4xf32, #tpu.memory_space<vmem>>, vector<1x4x4xf32>
      tpu.vector_store %arg3[%c0_25, %c0_26, %c0_27], %45 {strides = array<i32>} : memref<1x4x4xf32, #tpu.memory_space<vmem>>, vector<1x4x4xf32>,
      %cst_28 = arith.constant 0.000000e+00 : f32
      %47 = vector.broadcast %cst_28 : f32 to vector<1x4x1xf32>
      %c0_29 = arith.constant 0 : index
      %c0_30 = arith.constant 0 : index
      %c0_31 = arith.constant 0 : index
      %48 = vector.load %arg4[%c0_29, %c0_30, %c0_31] : memref<1x4x1xf32, #tpu.memory_space<vmem>>, vector<1x4x1xf32>
      tpu.vector_store %arg4[%c0_29, %c0_30, %c0_31], %47 {strides = array<i32>} : memref<1x4x1xf32, #tpu.memory_space<vmem>>, vector<1x4x1xf32>,
    } else {
    }
    %c128_i32 = arith.constant 128 : i32
    %3 = arith.muli %arg1, %c128_i32 : i32
    %4 = tpu.iota {dimensions = array<i32: 1>} : vector<1x128xi32>
    %5 = vector.broadcast %3 : i32 to vector<1x128xi32>
    %6 = arith.addi %5, %4 : vector<1x128xi32>
    %c64_i32 = arith.constant 64 : i32
    %7 = vector.broadcast %c64_i32 : i32 to vector<1x128xi32>
    %8 = arith.cmpi slt, %6, %7 : vector<1x128xi32>
    %cst = arith.constant 0.000000e+00 : f32
    %9 = vector.broadcast %cst : f32 to vector<4x4xf32>
    %cst_1 = arith.constant 0.000000e+00 : f32
    %10 = vector.broadcast %cst_1 : f32 to vector<4x1xf32>
    %c0 = arith.constant 0 : index
    %c0_2 = arith.constant 0 : index
    %c0_3 = arith.constant 0 : index
    %11 = vector.load %arg2[%c0, %c0_2, %c0_3] : memref<2x4x128xf32, #tpu.memory_space<vmem>>, vector<1x4x128xf32>
    %12 = vector.shape_cast %11 : vector<1x4x128xf32> to vector<4x128xf32>
    %cst_4 = arith.constant 0.000000e+00 : f32
    %13 = vector.broadcast %cst_4 : f32 to vector<4x128xf32>
    %14 = vector.shape_cast %8 : vector<1x128xi1> to vector<1x128xi1>
    %15 = vector.broadcast %14 : vector<1x128xi1> to vector<4x128xi1>
    %16 = arith.select %15, %12, %13 : vector<4x128xi1>, vector<4x128xf32>
    "tpu.trace_start"() <{level = 10 : i32, message = "cp,dp->cd"}> : () -> ()
    %cst_5 = arith.constant dense<0.000000e+00> : vector<4x4xf32>
    %17 = tpu.matmul %16, %16, %cst_5 {dimension_numbers = #tpu.dot_dimension_numbers<[1], [1], [0], [0], [0, 0, 1, 0], [], []>} : vector<4x128xf32>, vector<4x128xf32>, vector<4x4xf32> -> vector<4x4xf32>
    "tpu.trace_stop"() : () -> ()
    %18 = arith.addf %9, %17 : vector<4x4xf32>
    %cst_6 = arith.constant dense<0.000000e+00> : vector<4xf32>
    %19 = vector.multi_reduction <add>, %16, %cst_6 [1] : vector<4x128xf32> to vector<4xf32>
    %20 = vector.shape_cast %19 : vector<4xf32> to vector<4x1xf32>
    %21 = arith.addf %10, %20 : vector<4x1xf32>
    %c1 = arith.constant 1 : index
    %c0_7 = arith.constant 0 : index
    %c0_8 = arith.constant 0 : index
    %22 = vector.load %arg2[%c1, %c0_7, %c0_8] : memref<2x4x128xf32, #tpu.memory_space<vmem>>, vector<1x4x128xf32>
    %23 = vector.shape_cast %22 : vector<1x4x128xf32> to vector<4x128xf32>
    %cst_9 = arith.constant 0.000000e+00 : f32
    %24 = vector.broadcast %cst_9 : f32 to vector<4x128xf32>
    %25 = vector.shape_cast %8 : vector<1x128xi1> to vector<1x128xi1>
    %26 = vector.broadcast %25 : vector<1x128xi1> to vector<4x128xi1>
    %27 = arith.select %26, %23, %24 : vector<4x128xi1>, vector<4x128xf32>
    "tpu.trace_start"() <{level = 10 : i32, message = "cp,dp->cd"}> : () -> ()
    %cst_10 = arith.constant dense<0.000000e+00> : vector<4x4xf32>
    %28 = tpu.matmul %27, %27, %cst_10 {dimension_numbers = #tpu.dot_dimension_numbers<[1], [1], [0], [0], [0, 0, 1, 0], [], []>} : vector<4x128xf32>, vector<4x128xf32>, vector<4x4xf32> -> vector<4x4xf32>
    "tpu.trace_stop"() : () -> ()
    %29 = arith.addf %18, %28 : vector<4x4xf32>
    %cst_11 = arith.constant dense<0.000000e+00> : vector<4xf32>
    %30 = vector.multi_reduction <add>, %27, %cst_11 [1] : vector<4x128xf32> to vector<4xf32>
    %31 = vector.shape_cast %30 : vector<4xf32> to vector<4x1xf32>
    %32 = arith.addf %21, %31 : vector<4x1xf32>
    %c0_12 = arith.constant 0 : index
    %c0_13 = arith.constant 0 : index
    %c0_14 = arith.constant 0 : index
    %33 = vector.load %arg3[%c0_12, %c0_13, %c0_14] : memref<1x4x4xf32, #tpu.memory_space<vmem>>, vector<1x4x4xf32>
    %34 = vector.shape_cast %33 : vector<1x4x4xf32> to vector<4x4xf32>
    %35 = arith.addf %34, %29 : vector<4x4xf32>
    %c0_15 = arith.constant 0 : index
    %c0_16 = arith.constant 0 : index
    %c0_17 = arith.constant 0 : index
    %36 = vector.load %arg3[%c0_15, %c0_16, %c0_17] : memref<1x4x4xf32, #tpu.memory_space<vmem>>, vector<1x4x4xf32>
    %37 = vector.shape_cast %36 : vector<1x4x4xf32> to vector<4x4xf32>
    %38 = vector.shape_cast %35 : vector<4x4xf32> to vector<1x4x4xf32>
    tpu.vector_store %arg3[%c0_15, %c0_16, %c0_17], %38 {strides = array<i32>} : memref<1x4x4xf32, #tpu.memory_space<vmem>>, vector<1x4x4xf32>,
    %c0_18 = arith.constant 0 : index
    %c0_19 = arith.constant 0 : index
    %c0_20 = arith.constant 0 : index
    %39 = vector.load %arg4[%c0_18, %c0_19, %c0_20] : memref<1x4x1xf32, #tpu.memory_space<vmem>>, vector<1x4x1xf32>
    %40 = vector.shape_cast %39 : vector<1x4x1xf32> to vector<4x1xf32>
    %41 = arith.addf %40, %32 : vector<4x1xf32>
    %c0_21 = arith.constant 0 : index
    %c0_22 = arith.constant 0 : index
    %c0_23 = arith.constant 0 : index
    %42 = vector.load %arg4[%c0_21, %c0_22, %c0_23] : memref<1x4x1xf32, #tpu.memory_space<vmem>>, vector<1x4x1xf32>
    %43 = vector.shape_cast %42 : vector<1x4x1xf32> to vector<4x1xf32>
    %44 = vector.shape_cast %41 : vector<4x1xf32> to vector<1x4x1xf32>
    tpu.vector_store %arg4[%c0_21, %c0_22, %c0_23], %44 {strides = array<i32>} : memref<1x4x1xf32, #tpu.memory_space<vmem>>, vector<1x4x1xf32>,
    return
  }
  func.func @transform_0(%arg0: i32, %arg1: i32) -> (i32, i32, i32) {
    %c0_i32 = arith.constant 0 : i32
    %c0_i32_0 = arith.constant 0 : i32
    return %arg0, %c0_i32, %arg1 : i32, i32, i32
  }
  func.func @transform_1(%arg0: i32, %arg1: i32) -> (i32, i32, i32) {
    %c0_i32 = arith.constant 0 : i32
    %c0_i32_0 = arith.constant 0 : i32
    %c0_i32_1 = arith.constant 0 : i32
    return %arg0, %c0_i32, %c0_i32_0 : i32, i32, i32
  }
  func.func @transform_2(%arg0: i32, %arg1: i32) -> (i32, i32, i32) {
    %c0_i32 = arith.constant 0 : i32
    %c0_i32_0 = arith.constant 0 : i32
    %c0_i32_1 = arith.constant 0 : i32
    return %arg0, %c0_i32, %c0_i32_0 : i32, i32, i32
  }
}

</mosaic_0001>

<llo_original>
// kernel: tpu_custom_call.1
$region0: #{tpu_custom_call.1}
  #allocation0 [shape = 'u32[]', space=smem, size = 0x4, offset = 0x4, fixed_abs, tag = 'smem constant byte address 0x4 - core index']
  #allocation1 [shape = 'u32[72,128]{1,0:T(1,128)}', space=vmem, size = 0x9000, scoped, tag = 'internal scratch']
  %s0 = inlined_call_operand.hbm [shape: f32[2,4,64], index: 0, kind: input, shape index: {}]
  %s1 = inlined_call_operand.hbm [shape: f32[1,4,4], index: 1, kind: output, shape index: {0}]
  %s2 = inlined_call_operand.vmem [shape: f32[1,4,1], index: 2, kind: output, shape index: {1}]
  %3 = xla_tuple %s1, %s2
  %s4 = sld [smem:[#allocation0]]
  $region30: #{tpu_custom_call.1} parent=0
    _
  %s6 = ssub.s32 1, %s4
  %s7 = scalar_select 0, %s6, %s4
  $region1: #{tpu_custom_call.1} parent=0
    #allocation2 [shape = 'u8[4096]{0}', space=vmem, size = 0x1000, scoped, tag = 'input window, operand 0, single buffered']
    #allocation3 [shape = 's32[1]{0}', space=sflag, size = 0x4, scoped, tag = 'scoped memory for tpu_custom_call.1']
    #allocation4 [shape = 's32[1]{0}', space=sflag, size = 0x4, scoped, tag = 'scoped memory for tpu_custom_call.1']
    #allocation5 [shape = 'u8[2048]{0}', space=vmem, size = 0x800, scoped, tag = 'output window, operand 0, single buffered']
    %8 = vsyncpa [#allocation3], 0
    %9 = vsyncpa [#allocation4], 0
    // Predicated region
    $region2: #{tpu_custom_call.1} parent=1 // pred_check
      _
    $region3: #{tpu_custom_call.1} parent=1 // pred_check_branch
      %11 = sbr.rel (0) target = $region5
    $region4: #{tpu_custom_call.1} parent=1 // pred_region
      %13 = vsyncadd [#allocation3], 0
      %s14 = sshll.u32 %s0, 4
      %s15 = int_to_ptr.hbm [resolvable:$true] %s14
      %s16 = sshll.u32 [#allocation2], 4
      %s17 = int_to_ptr.vmem [resolvable:$true] %s16
      %22 = dma.hbm_to_vmem [thread:$0]  %s15, 128, %s17, [#allocation3], 64, 64, 4
    $region5: #{tpu_custom_call.1} parent=1 // pred_fallthru
      _
    // Predicated region
    $region6: #{tpu_custom_call.1} parent=1 // pred_check
      _
    $region7: #{tpu_custom_call.1} parent=1 // pred_check_branch
      %24 = sbr.rel (0) target = $region9
    $region8: #{tpu_custom_call.1} parent=1 // pred_region
      %26 = dma.done [#allocation3], 128
    $region9: #{tpu_custom_call.1} parent=1 // pred_fallthru
      _
    %p27 = scmp.eq.s32.totalorder 0, 0
    // Predicated region
    $region10: #{tpu_custom_call.1} parent=1 // pred_check
      %p28 = pneg %p27
    $region11: #{tpu_custom_call.1} parent=1 // pred_check_branch
      %30 = sbr.rel (%p28) target = $region13
    $region12: #{tpu_custom_call.1} parent=1 // pred_region
      %vm31 = vcmask 27648
      %32 = vst.msk [vmem:[#allocation5] sm:$0xf] %vm31, 0.0
      %vm33 = vcmask 3072
      %34 = vst.msk [vmem:[%s2] sm:$0xf] %vm33, 0.0
    $region13: #{tpu_custom_call.1} parent=1 // pred_fallthru
      _
    %s35 = smul.u32 0, 128
    %v36 = vlaneseq
    %v37 = vand.u32 %v36, 127
    %v38 = vstv %s35
    %v39 = vadd.s32 %v38, %v37
    %vm40 = vcmp.lt.s32.totalorder %v39, 64
    %v41 = vld [vmem:[#allocation2] sm:$0xf]
    %v42 = vsel %vm40, 1, 0
    %vm43 = vcmp.eq.s32.totalorder %v42, 1
    %v44 = vsel %vm43, %v41, 0.0
    %vm45 = vcmask 1043456
    %v46 = vsel %vm45, %v44, 0.0
    %47 = vadd.xlane.f32.xlu0 %v46
    %v48 = vpop.xlane.xlu0 %47
    %v49 = vadd.f32 %v48, 0.0
    %s50 = scalar_lea.vmem [#allocation2], 4
    %v51 = vld [vmem:[%s50] sm:$0xf]
    %v52 = vsel %vm43, %v51, 0.0
    %53 = vmatpush.xpose.msra.mxu0 0.0
    %54 = vmatpush.xpose.msra.mxu0 0.0
    %55 = vmatpush.xpose.msra.mxu0 0.0
    %56 = vmatpush.xpose.msra.mxu0 0.0
    %57 = vmatpush.xpose.msra.mxu0 0.0
    %58 = vmatpush.xpose.msra.mxu0 0.0
    %59 = vmatpush.xpose.msra.mxu0 0.0
    %60 = vmatpush.xpose.msra.mxu0 0.0
    %61 = vmatpush.xpose.msra.mxu0 0.0
    %62 = vmatpush.xpose.msra.mxu0 0.0
    %63 = vmatpush.xpose.msra.mxu0 0.0
    %64 = vmatpush.xpose.msra.mxu0 0.0
    %65 = vmatpush.xpose.msra.mxu0 0.0
    %66 = vmatpush.xpose.msra.mxu0 0.0
    %67 = vmatpush.xpose.msra.mxu0 0.0
    %68 = vmatpush.xpose.msra.mxu0 %v52
    %69 = vmatmul.f32.gmra.mxu0 %v52
    %v70 = vpop.f32.mrf.mxu0
    %v71 = vadd.f32 0.0, %v70
    %72 = vdwg.mxu0
    %73 = vmatpush.xpose.msra.mxu0 0.0
    %74 = vmatpush.xpose.msra.mxu0 0.0
    %75 = vmatpush.xpose.msra.mxu0 0.0
    %76 = vmatpush.xpose.msra.mxu0 0.0
    %77 = vmatpush.xpose.msra.mxu0 0.0
    %78 = vmatpush.xpose.msra.mxu0 0.0
    %79 = vmatpush.xpose.msra.mxu0 0.0
    %80 = vmatpush.xpose.msra.mxu0 0.0
    %81 = vmatpush.xpose.msra.mxu0 0.0
    %82 = vmatpush.xpose.msra.mxu0 0.0
    %83 = vmatpush.xpose.msra.mxu0 0.0
    %84 = vmatpush.xpose.msra.mxu0 0.0
    %85 = vmatpush.xpose.msra.mxu0 0.0
    %86 = vmatpush.xpose.msra.mxu0 0.0
    %87 = vmatpush.xpose.msra.mxu0 0.0
    %88 = vmatpush.xpose.msra.mxu0 %v44
    %89 = vmatmul.f32.gmra.mxu0 %v44
    %v90 = vpop.f32.mrf.mxu0
    %v91 = vadd.f32 %v71, %v90
    %92 = vdwg.mxu0
    %v93 = vsel %vm45, %v52, 0.0
    %94 = vadd.xlane.f32.xlu0 %v93
    %v95 = vpop.xlane.xlu0 %94
    %v96 = vadd.f32 %v49, %v95
    %v97 = vld [vmem:[#allocation5] sm:$0xf]
    %v98 = vadd.f32 %v97, %v91
    %vm99 = vcmask 27648
    %100 = vst.msk [vmem:[#allocation5] sm:$0xf] %vm99, %v98
    %v101 = vld [vmem:[%s2] sm:$0xf]
    %v102 = vadd.f32 %v101, %v96
    %vm103 = vcmask 3072
    %104 = vst.msk [vmem:[%s2] sm:$0xf] %vm103, %v102
    // Predicated region
    $region14: #{tpu_custom_call.1} parent=1 // pred_check
      _
    $region15: #{tpu_custom_call.1} parent=1 // pred_check_branch
      %106 = sbr.rel (0) target = $region17
    $region16: #{tpu_custom_call.1} parent=1 // pred_region
      %108 = vsyncadd [#allocation4], 0
      %s110 = sshll.u32 [#allocation5], 4
      %s111 = int_to_ptr.vmem [resolvable:$true] %s110
      %s112 = sshll.u32 %s1, 4
      %s113 = int_to_ptr.hbm [resolvable:$true] %s112
      %115 = dma.vmem_to_hbm [thread:$0]  %s111, 64, %s113, [#allocation4]
    $region17: #{tpu_custom_call.1} parent=1 // pred_fallthru
      _
    // Predicated region
    $region18: #{tpu_custom_call.1} parent=1 // pred_check
      _
    $region19: #{tpu_custom_call.1} parent=1 // pred_check_branch
      %117 = sbr.rel (0) target = $region21
    $region20: #{tpu_custom_call.1} parent=1 // pred_region
      _
    $region21: #{tpu_custom_call.1} parent=1 // pred_fallthru
      _
    // Predicated region
    $region22: #{tpu_custom_call.1} parent=1 // pred_check
      _
    $region23: #{tpu_custom_call.1} parent=1 // pred_check_branch
      %119 = sbr.rel (0) target = $region25
    $region24: #{tpu_custom_call.1} parent=1 // pred_region
      %121 = dma.done [#allocation4], 64
    $region25: #{tpu_custom_call.1} parent=1 // pred_fallthru
      _
    // Predicated region
    $region26: #{tpu_custom_call.1} parent=1 // pred_check
      _
    $region27: #{tpu_custom_call.1} parent=1 // pred_check_branch
      %123 = sbr.rel (0) target = $region29
    $region28: #{tpu_custom_call.1} parent=1 // pred_region
      _
    $region29: #{tpu_custom_call.1} parent=1 // pred_fallthru
      _
    %124 = vsyncpa [#allocation3], 1
    %125 = vsyncpa [#allocation4], 1

</llo_original>
